<compile_context>
chip_gen: v6e
topology: v6e:2x2x1
jax: 0.10.0
libtpu: 0.0.40
codegen_flags: <defaults>
</compile_context>

<pallas_src>
import functools
import math

import jax
import jax.numpy as jnp
from jax.experimental import pallas as pl
from jax.experimental.pallas import tpu as pltpu

NUM_CLASSES = 65
EPSILON = 1e-07
_E = 2.718281828459045  # exp(1.0)


def _f1_loss_kernel(yp_ref, yt_ref, out_ref, tp_acc, sp_acc, st_acc, *,
                    num_classes, c_pad, epsilon):
    i = pl.program_id(0)

    @pl.when(i == 0)
    def _init():
        tp_acc[...] = jnp.zeros_like(tp_acc)
        sp_acc[...] = jnp.zeros_like(sp_acc)
        st_acc[...] = jnp.zeros_like(st_acc)

    yp = yp_ref[...]          # (Bt, S) int32 predicted class indices
    yt = yt_ref[...]          # (Bt, S) int32 true class indices
    bt, s = yp.shape

    class_ids = jax.lax.broadcasted_iota(jnp.int32, (bt, s, c_pad), 2)
    hot_p = yp[:, :, None] == class_ids          # (Bt, S, Cp) bool
    hot_t = yt[:, :, None] == class_ids          # (Bt, S, Cp) bool

    # softmax over the S axis of a {0,1} one-hot:
    #   exp(x) in {exp(0), exp(1)}  ->  VPU select, no EUP exp, no max-subtract.
    e = jnp.where(hot_p, jnp.float32(_E), jnp.float32(1.0))     # (Bt, S, Cp)
    denom = jnp.sum(e, axis=1, keepdims=True)                   # (Bt, 1, Cp)
    inv = pl.reciprocal(denom, approx=True)                     # Bt*Cp recips
    sp = e * inv                                                # softmax(one_hot)

    # Partial per-(S, C) sums over this batch tile.
    tp_acc[...] += jnp.sum(jnp.where(hot_t, sp, 0.0), axis=0)   # sum(oh_t * sp)
    sp_acc[...] += jnp.sum(sp, axis=0)                          # sum(sp)
    st_acc[...] += jnp.sum(hot_t.astype(jnp.float32), axis=0)   # sum(oh_t)

    @pl.when(i == pl.num_programs(0) - 1)
    def _finalize():
        tp = tp_acc[...]
        fp = sp_acc[...] - tp        # sum((1 - oh_t) * sp) = Sp - tp
        fn = st_acc[...] - tp        # sum(oh_t * (1 - sp)) = St - tp
        precision = tp / (tp + fp + epsilon)
        recall = tp / (tp + fn + epsilon)
        f1 = 2.0 * (precision * recall) / (precision + recall + epsilon)
        f1 = jnp.clip(f1, epsilon, 1.0 - epsilon)
        # Mask the lane-padding classes (c >= num_classes) out of the mean.
        lane = jax.lax.broadcasted_iota(jnp.int32, f1.shape, 1)
        f1 = jnp.where(lane < num_classes, f1, 0.0)
        total = jnp.sum(jnp.sum(f1, axis=1, keepdims=True), axis=0,
                        keepdims=True)                           # (1, 1)
        out_ref[...] = 1.0 - total / jnp.float32(s * num_classes)


def _choose_batch_tile(b, s, c_pad):
    """Largest batch tile keeping the live (Bt,S,Cp) f32 intermediates to a few
    MiB, satisfying the TPU block constraint (multiple of 8, or the full B)."""
    budget_bytes = 2 * 1024 * 1024          # target per live intermediate set
    per_row = s * c_pad * 4 * 3             # ~3 live (S,Cp) f32 slabs per row
    target = max(8, budget_bytes // max(per_row, 1))
    if b <= target or b % 8 != 0:
        return b                            # single block / full-dim block
    bt = (min(target, b) // 8) * 8
    while bt > 8 and b % bt != 0:
        bt -= 8
    return bt if b % bt == 0 else b


def f1_loss_crf(y_pred, y_true, num_classes=NUM_CLASSES, epsilon=EPSILON):
    assert y_pred.ndim == 2
    assert y_true.ndim == 2
    assert y_pred.shape == y_true.shape
    b, s = y_pred.shape
    c_pad = 128 * math.ceil(num_classes / 128)   # lane-aligned class axis
    bt = _choose_batch_tile(b, s, c_pad)
    num_blocks = b // bt

    kernel = functools.partial(
        _f1_loss_kernel, num_classes=num_classes, c_pad=c_pad, epsilon=epsilon)

    cost = pl.CostEstimate(
        flops=10 * b * s * c_pad,
        transcendentals=b * c_pad,               # approx reciprocals
        bytes_accessed=2 * b * s * 4 + 4)

    out = pl.pallas_call(
        kernel,
        out_shape=jax.ShapeDtypeStruct((1, 1), jnp.float32),
        grid_spec=pltpu.PrefetchScalarGridSpec(
            num_scalar_prefetch=0,
            grid=(num_blocks,),
            in_specs=[
                pl.BlockSpec((bt, s), lambda i: (i, 0)),
                pl.BlockSpec((bt, s), lambda i: (i, 0)),
            ],
            out_specs=pl.BlockSpec((1, 1), lambda i: (0, 0)),
            scratch_shapes=[
                pltpu.VMEM((s, c_pad), jnp.float32),   # tp accumulator
                pltpu.VMEM((s, c_pad), jnp.float32),   # sum(softmax) accumulator
                pltpu.VMEM((s, c_pad), jnp.float32),   # sum(one_hot true) acc
            ]),
        compiler_params=pltpu.CompilerParams(
            dimension_semantics=("arbitrary",)),       # batch axis is a reduction
        cost_estimate=cost,
    )(y_pred.astype(jnp.int32), y_true.astype(jnp.int32))
    return out[0, 0]


def _f1_loss_crf_ref(y_pred, y_true, num_classes=NUM_CLASSES, epsilon=EPSILON):
    """Pure-JAX reference mirroring the PyTorch forward, for verification."""
    oh_t = jax.nn.one_hot(y_true, num_classes, dtype=jnp.float32)
    oh_p = jax.nn.one_hot(y_pred, num_classes, dtype=jnp.float32)
    sp = jax.nn.softmax(oh_p, axis=1)
    tp = jnp.sum(oh_t * sp, axis=0)
    fp = jnp.sum((1.0 - oh_t) * sp, axis=0)
    fn = jnp.sum(oh_t * (1.0 - sp), axis=0)
    precision = tp / (tp + fp + epsilon)
    recall = tp / (tp + fn + epsilon)
    f1 = 2.0 * precision * recall / (precision + recall + epsilon)
    f1 = jnp.clip(f1, epsilon, 1.0 - epsilon)
    return 1.0 - jnp.mean(f1)


if __name__ == "__main__":
    B, S = 2, 8
    key = jax.random.PRNGKey(0)
    k1, k2 = jax.random.split(key)
    y_pred = jax.random.randint(k1, (B, S), 0, NUM_CLASSES, dtype=jnp.int32)
    y_true = jax.random.randint(k2, (B, S), 0, NUM_CLASSES, dtype=jnp.int32)

    loss = f1_loss_crf(y_pred, y_true)
    jax.block_until_ready(loss)

    ref = _f1_loss_crf_ref(y_pred, y_true)
    # approx reciprocal in the kernel -> allow a slightly looser (still tight)
    # tolerance than pure f32.
    assert jnp.allclose(loss, ref, rtol=1e-4, atol=1e-5), (loss, ref)

    print("KERNEL_OK")
</pallas_src>

<mosaic_0001>
module attributes {stable_mosaic.version = 11 : i64} {
  func.func @_f1_loss_kernel(%arg0: i32, %arg1: memref<2x8xi32, #tpu.memory_space<vmem>>, %arg2: memref<2x8xi32, #tpu.memory_space<vmem>>, %arg3: memref<1x1xf32, #tpu.memory_space<vmem>>, %arg4: memref<8x128xf32, #tpu.memory_space<vmem>>, %arg5: memref<8x128xf32, #tpu.memory_space<vmem>>, %arg6: memref<8x128xf32, #tpu.memory_space<vmem>>) attributes {dimension_semantics = [#tpu.dimension_semantics<arbitrary>], iteration_bounds = array<i64: 1>, scalar_prefetch = 0 : i64, scratch_operands = 3 : i64, tpu.core_type = #tpu.core_type<tc>, window_params = [{transform_indices = @transform_0, window_bounds = array<i64: 2, 8>}, {transform_indices = @transform_1, window_bounds = array<i64: 2, 8>}, {pipeline_mode = #tpu.pipeline_mode<synchronous>, transform_indices = @transform_2, window_bounds = array<i64: 1, 1>}]} {
    %c0_i32 = arith.constant 0 : i32
    %0 = arith.cmpi eq, %arg0, %c0_i32 : i32
    %1 = arith.extui %0 : i1 to i32
    %c0_i32_0 = arith.constant 0 : i32
    %2 = arith.cmpi ne, %1, %c0_i32_0 : i32
    scf.if %2 {
      %cst_24 = arith.constant 0.000000e+00 : f32
      %39 = vector.broadcast %cst_24 : f32 to vector<8x128xf32>
      %c0_25 = arith.constant 0 : index
      %c0_26 = arith.constant 0 : index
      %40 = vector.load %arg4[%c0_25, %c0_26] : memref<8x128xf32, #tpu.memory_space<vmem>>, vector<8x128xf32>
      tpu.vector_store %arg4[%c0_25, %c0_26], %39 {strides = array<i32>} : memref<8x128xf32, #tpu.memory_space<vmem>>, vector<8x128xf32>,
      %cst_27 = arith.constant 0.000000e+00 : f32
      %41 = vector.broadcast %cst_27 : f32 to vector<8x128xf32>
      %c0_28 = arith.constant 0 : index
      %c0_29 = arith.constant 0 : index
      %42 = vector.load %arg5[%c0_28, %c0_29] : memref<8x128xf32, #tpu.memory_space<vmem>>, vector<8x128xf32>
      tpu.vector_store %arg5[%c0_28, %c0_29], %41 {strides = array<i32>} : memref<8x128xf32, #tpu.memory_space<vmem>>, vector<8x128xf32>,
      %cst_30 = arith.constant 0.000000e+00 : f32
      %43 = vector.broadcast %cst_30 : f32 to vector<8x128xf32>
      %c0_31 = arith.constant 0 : index
      %c0_32 = arith.constant 0 : index
      %44 = vector.load %arg6[%c0_31, %c0_32] : memref<8x128xf32, #tpu.memory_space<vmem>>, vector<8x128xf32>
      tpu.vector_store %arg6[%c0_31, %c0_32], %43 {strides = array<i32>} : memref<8x128xf32, #tpu.memory_space<vmem>>, vector<8x128xf32>,
    } else {
    }
    %c0 = arith.constant 0 : index
    %c0_1 = arith.constant 0 : index
    %3 = vector.load %arg1[%c0, %c0_1] : memref<2x8xi32, #tpu.memory_space<vmem>>, vector<2x8xi32>
    %c0_2 = arith.constant 0 : index
    %c0_3 = arith.constant 0 : index
    %4 = vector.load %arg2[%c0_2, %c0_3] : memref<2x8xi32, #tpu.memory_space<vmem>>, vector<2x8xi32>
    %5 = tpu.iota {dimensions = array<i32: 2>} : vector<2x8x128xi32>
    %6 = vector.shape_cast %3 : vector<2x8xi32> to vector<2x8x1xi32>
    %7 = vector.broadcast %6 : vector<2x8x1xi32> to vector<2x8x128xi32>
    %8 = arith.cmpi eq, %7, %5 : vector<2x8x128xi32>
    %9 = vector.shape_cast %4 : vector<2x8xi32> to vector<2x8x1xi32>
    %10 = vector.broadcast %9 : vector<2x8x1xi32> to vector<2x8x128xi32>
    %11 = arith.cmpi eq, %10, %5 : vector<2x8x128xi32>
    %cst = arith.constant 2.71828175 : f32
    %cst_4 = arith.constant 1.000000e+00 : f32
    %12 = vector.broadcast %cst : f32 to vector<2x8x128xf32>
    %13 = vector.broadcast %cst_4 : f32 to vector<2x8x128xf32>
    %14 = arith.select %8, %12, %13 : vector<2x8x128xi1>, vector<2x8x128xf32>
    %cst_5 = arith.constant dense<0.000000e+00> : vector<2x128xf32>
    %15 = vector.multi_reduction <add>, %14, %cst_5 [1] : vector<2x8x128xf32> to vector<2x128xf32>
    %16 = vector.shape_cast %15 : vector<2x128xf32> to vector<2x1x128xf32>
    %17 = tpu.reciprocal %16 {approx = true} : vector<2x1x128xf32> -> vector<2x1x128xf32>
    %18 = vector.broadcast %17 : vector<2x1x128xf32> to vector<2x8x128xf32>
    %19 = arith.mulf %14, %18 : vector<2x8x128xf32>
    %c0_6 = arith.constant 0 : index
    %c0_7 = arith.constant 0 : index
    %20 = vector.load %arg4[%c0_6, %c0_7] : memref<8x128xf32, #tpu.memory_space<vmem>>, vector<8x128xf32>
    %cst_8 = arith.constant 0.000000e+00 : f32
    %21 = vector.broadcast %cst_8 : f32 to vector<2x8x128xf32>
    %22 = arith.select %11, %19, %21 : vector<2x8x128xi1>, vector<2x8x128xf32>
    %cst_9 = arith.constant dense<0.000000e+00> : vector<8x128xf32>
    %23 = vector.multi_reduction <add>, %22, %cst_9 [0] : vector<2x8x128xf32> to vector<8x128xf32>
    %24 = arith.addf %20, %23 : vector<8x128xf32>
    %c0_10 = arith.constant 0 : index
    %c0_11 = arith.constant 0 : index
    %25 = vector.load %arg4[%c0_10, %c0_11] : memref<8x128xf32, #tpu.memory_space<vmem>>, vector<8x128xf32>
    tpu.vector_store %arg4[%c0_10, %c0_11], %24 {strides = array<i32>} : memref<8x128xf32, #tpu.memory_space<vmem>>, vector<8x128xf32>,
    %c0_12 = arith.constant 0 : index
    %c0_13 = arith.constant 0 : index
    %26 = vector.load %arg5[%c0_12, %c0_13] : memref<8x128xf32, #tpu.memory_space<vmem>>, vector<8x128xf32>
    %cst_14 = arith.constant dense<0.000000e+00> : vector<8x128xf32>
    %27 = vector.multi_reduction <add>, %19, %cst_14 [0] : vector<2x8x128xf32> to vector<8x128xf32>
    %28 = arith.addf %26, %27 : vector<8x128xf32>
    %c0_15 = arith.constant 0 : index
    %c0_16 = arith.constant 0 : index
    %29 = vector.load %arg5[%c0_15, %c0_16] : memref<8x128xf32, #tpu.memory_space<vmem>>, vector<8x128xf32>
    tpu.vector_store %arg5[%c0_15, %c0_16], %28 {strides = array<i32>} : memref<8x128xf32, #tpu.memory_space<vmem>>, vector<8x128xf32>,
    %c0_17 = arith.constant 0 : index
    %c0_18 = arith.constant 0 : index
    %30 = vector.load %arg6[%c0_17, %c0_18] : memref<8x128xf32, #tpu.memory_space<vmem>>, vector<8x128xf32>
    %31 = arith.extui %11 : vector<2x8x128xi1> to vector<2x8x128xi32>
    %32 = arith.sitofp %31 : vector<2x8x128xi32> to vector<2x8x128xf32>
    %cst_19 = arith.constant dense<0.000000e+00> : vector<8x128xf32>
    %33 = vector.multi_reduction <add>, %32, %cst_19 [0] : vector<2x8x128xf32> to vector<8x128xf32>
    %34 = arith.addf %30, %33 : vector<8x128xf32>
    %c0_20 = arith.constant 0 : index
    %c0_21 = arith.constant 0 : index
    %35 = vector.load %arg6[%c0_20, %c0_21] : memref<8x128xf32, #tpu.memory_space<vmem>>, vector<8x128xf32>
    tpu.vector_store %arg6[%c0_20, %c0_21], %34 {strides = array<i32>} : memref<8x128xf32, #tpu.memory_space<vmem>>, vector<8x128xf32>,
    %c0_i32_22 = arith.constant 0 : i32
    %36 = arith.cmpi eq, %arg0, %c0_i32_22 : i32
    %37 = arith.extui %36 : i1 to i32
    %c0_i32_23 = arith.constant 0 : i32
    %38 = arith.cmpi ne, %37, %c0_i32_23 : i32
    scf.if %38 {
      %c0_24 = arith.constant 0 : index
      %c0_25 = arith.constant 0 : index
      %39 = vector.load %arg4[%c0_24, %c0_25] : memref<8x128xf32, #tpu.memory_space<vmem>>, vector<8x128xf32>
      %c0_26 = arith.constant 0 : index
      %c0_27 = arith.constant 0 : index
      %40 = vector.load %arg5[%c0_26, %c0_27] : memref<8x128xf32, #tpu.memory_space<vmem>>, vector<8x128xf32>
      %41 = arith.subf %40, %39 : vector<8x128xf32>
      %c0_28 = arith.constant 0 : index
      %c0_29 = arith.constant 0 : index
      %42 = vector.load %arg6[%c0_28, %c0_29] : memref<8x128xf32, #tpu.memory_space<vmem>>, vector<8x128xf32>
      %43 = arith.subf %42, %39 : vector<8x128xf32>
      %44 = arith.addf %39, %41 : vector<8x128xf32>
      %cst_30 = arith.constant 1.000000e-07 : f32
      %45 = vector.broadcast %cst_30 : f32 to vector<8x128xf32>
      %46 = arith.addf %44, %45 : vector<8x128xf32>
      %47 = arith.divf %39, %46 : vector<8x128xf32>
      %48 = arith.addf %39, %43 : vector<8x128xf32>
      %cst_31 = arith.constant 1.000000e-07 : f32
      %49 = vector.broadcast %cst_31 : f32 to vector<8x128xf32>
      %50 = arith.addf %48, %49 : vector<8x128xf32>
      %51 = arith.divf %39, %50 : vector<8x128xf32>
      %52 = arith.mulf %47, %51 : vector<8x128xf32>
      %cst_32 = arith.constant 2.000000e+00 : f32
      %53 = vector.broadcast %cst_32 : f32 to vector<8x128xf32>
      %54 = arith.mulf %53, %52 : vector<8x128xf32>
      %55 = arith.addf %47, %51 : vector<8x128xf32>
      %cst_33 = arith.constant 1.000000e-07 : f32
      %56 = vector.broadcast %cst_33 : f32 to vector<8x128xf32>
      %57 = arith.addf %55, %56 : vector<8x128xf32>
      %58 = arith.divf %54, %57 : vector<8x128xf32>
      %cst_34 = arith.constant 1.000000e-07 : f32
      %cst_35 = arith.constant 0.99999988 : f32
      %59 = vector.broadcast %cst_34 : f32 to vector<8x128xf32>
      %60 = arith.maximumf %59, %58 : vector<8x128xf32>
      %61 = vector.broadcast %cst_35 : f32 to vector<8x128xf32>
      %62 = arith.minimumf %61, %60 : vector<8x128xf32>
      %63 = tpu.iota {dimensions = array<i32: 1>} : vector<8x128xi32>
      %c65_i32 = arith.constant 65 : i32
      %64 = vector.broadcast %c65_i32 : i32 to vector<8x128xi32>
      %65 = arith.cmpi slt, %63, %64 : vector<8x128xi32>
      %cst_36 = arith.constant 0.000000e+00 : f32
      %66 = vector.broadcast %cst_36 : f32 to vector<8x128xf32>
      %67 = arith.select %65, %62, %66 : vector<8x128xi1>, vector<8x128xf32>
      %cst_37 = arith.constant dense<0.000000e+00> : vector<8xf32>
      %68 = vector.multi_reduction <add>, %67, %cst_37 [1] : vector<8x128xf32> to vector<8xf32>
      %69 = vector.shape_cast %68 : vector<8xf32> to vector<8x1xf32>
      %cst_38 = arith.constant dense<0.000000e+00> : vector<1xf32>
      %70 = vector.multi_reduction <add>, %69, %cst_38 [0] : vector<8x1xf32> to vector<1xf32>
      %71 = vector.shape_cast %70 : vector<1xf32> to vector<1x1xf32>
      %cst_39 = arith.constant 5.200000e+02 : f32
      %72 = vector.broadcast %cst_39 : f32 to vector<1x1xf32>
      %73 = arith.divf %71, %72 : vector<1x1xf32>
      %cst_40 = arith.constant 1.000000e+00 : f32
      %74 = vector.broadcast %cst_40 : f32 to vector<1x1xf32>
      %75 = arith.subf %74, %73 : vector<1x1xf32>
      %c0_41 = arith.constant 0 : index
      %c0_42 = arith.constant 0 : index
      %76 = vector.load %arg3[%c0_41, %c0_42] : memref<1x1xf32, #tpu.memory_space<vmem>>, vector<1x1xf32>
      tpu.vector_store %arg3[%c0_41, %c0_42], %75 {strides = array<i32>} : memref<1x1xf32, #tpu.memory_space<vmem>>, vector<1x1xf32>,
    } else {
    }
    return
  }
  func.func @transform_0(%arg0: i32) -> (i32, i32) {
    %c0_i32 = arith.constant 0 : i32
    %c0_i32_0 = arith.constant 0 : i32
    return %arg0, %c0_i32 : i32, i32
  }
  func.func @transform_1(%arg0: i32) -> (i32, i32) {
    %c0_i32 = arith.constant 0 : i32
    %c0_i32_0 = arith.constant 0 : i32
    return %arg0, %c0_i32 : i32, i32
  }
  func.func @transform_2(%arg0: i32) -> (i32, i32) {
    %c0_i32 = arith.constant 0 : i32
    %c0_i32_0 = arith.constant 0 : i32
    %c0_i32_1 = arith.constant 0 : i32
    return %c0_i32, %c0_i32_0 : i32, i32
  }
}

</mosaic_0001>

<llo_original>
// kernel: tpu_custom_call.1
$region0: #{tpu_custom_call.1}
  #allocation0 [shape = 'u32[]', space=smem, size = 0x4, offset = 0x4, fixed_abs, tag = 'smem constant byte address 0x4 - core index']
  #allocation1 [shape = 'u32[144,128]{1,0:T(1,128)}', space=vmem, size = 0x12000, scoped, tag = 'internal scratch']
  #allocation2 [shape = 'f32[8,128]{1,0:T(8,128)}', space=vmem, size = 0x1000, scoped, tag = 'scratch operand']
  #allocation3 [shape = 'f32[8,128]{1,0:T(8,128)}', space=vmem, size = 0x1000, scoped, tag = 'scratch operand']
  #allocation4 [shape = 'f32[8,128]{1,0:T(8,128)}', space=vmem, size = 0x1000, scoped, tag = 'scratch operand']
  %s0 = inlined_call_operand.hbm [shape: s32[2,8], index: 0, kind: input, shape index: {}]
  %s1 = inlined_call_operand.hbm [shape: s32[2,8], index: 1, kind: input, shape index: {}]
  %s2 = inlined_call_operand.hbm [shape: f32[1,1], index: 2, kind: output, shape index: {}]
  %s3 = sld [smem:[#allocation0]]
  $region34: #{tpu_custom_call.1} parent=0
    _
  %s5 = ssub.s32 1, %s3
  %s6 = scalar_select 0, %s5, %s3
  $region1: #{tpu_custom_call.1} parent=0
    #allocation5 [shape = 'u8[1024]{0}', space=vmem, size = 0x400, scoped, tag = 'input window, operand 0, single buffered']
    #allocation6 [shape = 's32[1]{0}', space=sflag, size = 0x4, scoped, tag = 'scoped memory for tpu_custom_call.1']
    #allocation7 [shape = 's32[1]{0}', space=sflag, size = 0x4, scoped, tag = 'scoped memory for tpu_custom_call.1']
    #allocation8 [shape = 'u8[1024]{0}', space=vmem, size = 0x400, scoped, tag = 'input window, operand 1, single buffered']
    #allocation9 [shape = 's32[1]{0}', space=sflag, size = 0x4, scoped, tag = 'scoped memory for tpu_custom_call.1']
    #allocation10 [shape = 'u8[512]{0}', space=vmem, size = 0x400, scoped, tag = 'output window, operand 0, single buffered']
    %7 = vsyncpa [#allocation6], 0
    %8 = vsyncpa [#allocation9], 0
    %9 = vsyncpa [#allocation7], 0
    // Predicated region
    $region2: #{tpu_custom_call.1} parent=1 // pred_check
      _
    $region3: #{tpu_custom_call.1} parent=1 // pred_check_branch
      %11 = sbr.rel (0) target = $region5
    $region4: #{tpu_custom_call.1} parent=1 // pred_region
      %s13 = ssub.s32 32, 32
      %14 = vsyncadd [#allocation6], %s13
      %s16 = sshll.u32 [#allocation5], 4
      %s17 = int_to_ptr.vmem [resolvable:$true] %s16
      %19 = dma.hbm_to_vmem [thread:$0]  %s0, 32, %s17, [#allocation6]
    $region5: #{tpu_custom_call.1} parent=1 // pred_fallthru
      _
    // Predicated region
    $region6: #{tpu_custom_call.1} parent=1 // pred_check
      _
    $region7: #{tpu_custom_call.1} parent=1 // pred_check_branch
      %21 = sbr.rel (0) target = $region9
    $region8: #{tpu_custom_call.1} parent=1 // pred_region
      %s23 = ssub.s32 32, 32
      %24 = vsyncadd [#allocation9], %s23
      %s26 = sshll.u32 [#allocation8], 4
      %s27 = int_to_ptr.vmem [resolvable:$true] %s26
      %29 = dma.hbm_to_vmem [thread:$0]  %s1, 32, %s27, [#allocation9]
    $region9: #{tpu_custom_call.1} parent=1 // pred_fallthru
      _
    // Predicated region
    $region10: #{tpu_custom_call.1} parent=1 // pred_check
      _
    $region11: #{tpu_custom_call.1} parent=1 // pred_check_branch
      %31 = sbr.rel (0) target = $region13
    $region12: #{tpu_custom_call.1} parent=1 // pred_region
      %32 = dma.done [#allocation6], 32
    $region13: #{tpu_custom_call.1} parent=1 // pred_fallthru
      _
    // Predicated region
    $region14: #{tpu_custom_call.1} parent=1 // pred_check
      _
    $region15: #{tpu_custom_call.1} parent=1 // pred_check_branch
      %34 = sbr.rel (0) target = $region17
    $region16: #{tpu_custom_call.1} parent=1 // pred_region
      %35 = dma.done [#allocation9], 32
    $region17: #{tpu_custom_call.1} parent=1 // pred_fallthru
      _
    %p36 = scmp.eq.s32.totalorder 0, 0
    // Predicated region
    $region18: #{tpu_custom_call.1} parent=1 // pred_check
      %p37 = pneg %p36
    $region19: #{tpu_custom_call.1} parent=1 // pred_check_branch
      %39 = sbr.rel (%p37) target = $region21
    $region20: #{tpu_custom_call.1} parent=1 // pred_region
      %40 = vst [vmem:[#allocation2] sm:$0xff] 0.0
      %41 = vst [vmem:[#allocation3] sm:$0xff] 0.0
      %42 = vst [vmem:[#allocation4] sm:$0xff] 0.0
    $region21: #{tpu_custom_call.1} parent=1 // pred_fallthru
      _
    %v43 = vld [vmem:[#allocation5] sm:$0x3]
    %v44 = vld [vmem:[#allocation8] sm:$0x3]
    %v45 = vlaneseq
    %v46 = vand.u32 %v45, 127
    %v47 = vlaneseq
    %v48 = vshrl.u32 %v47, 7
    %v49 = vsub.s32 0, %v48
    %v50 = vrot.slane %v43, %v49
    %52 = vbcast.lane.b32.xlu0 %v50, 256
    %v53 = vpop.permute.xlu0 %52
    %v54 = vlaneseq
    %v55 = vshrl.u32 %v54, 7
    %v56 = vsub.s32 1, %v55
    %v57 = vrot.slane %v43, %v56
    %59 = vbcast.lane.b32.xlu0 %v57, 256
    %v60 = vpop.permute.xlu0 %59
    %vm61 = vcmp.eq.s32.totalorder %v53, %v46
    %vm62 = vcmp.eq.s32.totalorder %v60, %v46
    %v63 = vlaneseq
    %v64 = vshrl.u32 %v63, 7
    %v65 = vsub.s32 0, %v64
    %v66 = vrot.slane %v44, %v65
    %68 = vbcast.lane.b32.xlu0 %v66, 256
    %v69 = vpop.permute.xlu0 %68
    %v70 = vlaneseq
    %v71 = vshrl.u32 %v70, 7
    %v72 = vsub.s32 1, %v71
    %v73 = vrot.slane %v44, %v72
    %75 = vbcast.lane.b32.xlu0 %v73, 256
    %v76 = vpop.permute.xlu0 %75
    %vm77 = vcmp.eq.s32.totalorder %v69, %v46
    %vm78 = vcmp.eq.s32.totalorder %v76, %v46
    %v79 = vsel %vm61, 2.7182817, 1.0
    %v80 = vsel %vm62, 2.7182817, 1.0
    %v81 = vrot.slane %v79, 4
    %v82 = vadd.f32 %v79, %v81
    %v83 = vrot.slane %v82, 2
    %v84 = vadd.f32 %v82, %v83
    %v85 = vrot.slane %v84, 1
    %v86 = vadd.f32 %v84, %v85
    %v87 = vrot.slane %v80, 4
    %v88 = vadd.f32 %v80, %v87
    %v89 = vrot.slane %v88, 2
    %v90 = vadd.f32 %v88, %v89
    %v91 = vrot.slane %v90, 1
    %v92 = vadd.f32 %v90, %v91
    %v93 = vrcp.pop %v86
    %v94 = vrcp.pop %v92
    %v95 = vmul.f32 %v79, %v93
    %v96 = vmul.f32 %v80, %v94
    %v97 = vld [vmem:[#allocation2] sm:$0xff]
    %v98 = vsel %vm77, %v95, 0.0
    %v99 = vsel %vm78, %v96, 0.0
    %v100 = vadd.f32 %v98, %v99
    %v101 = vadd.f32 %v97, %v100
    %102 = vst [vmem:[#allocation2] sm:$0xff] %v101
    %v103 = vld [vmem:[#allocation3] sm:$0xff]
    %v104 = vadd.f32 %v95, %v96
    %v105 = vadd.f32 %v103, %v104
    %106 = vst [vmem:[#allocation3] sm:$0xff] %v105
    %v107 = vld [vmem:[#allocation4] sm:$0xff]
    %v108 = vsel %vm77, 1, 0
    %v109 = vsel %vm78, 1, 0
    %v110 = vcvt.s32.f32 %v108
    %v111 = vcvt.s32.f32 %v109
    %v112 = vadd.f32 %v110, %v111
    %v113 = vadd.f32 %v107, %v112
    %114 = vst [vmem:[#allocation4] sm:$0xff] %v113
    // Predicated region
    $region22: #{tpu_custom_call.1} parent=1 // pred_check
      %p115 = pneg %p36
    $region23: #{tpu_custom_call.1} parent=1 // pred_check_branch
      %117 = sbr.rel (%p115) target = $region25
    $region24: #{tpu_custom_call.1} parent=1 // pred_region
      %v118 = vld [vmem:[#allocation2] sm:$0xff]
      %v119 = vld [vmem:[#allocation3] sm:$0xff]
      %v120 = vsub.f32 %v119, %v118
      %v121 = vld [vmem:[#allocation4] sm:$0xff]
      %v122 = vsub.f32 %v121, %v118
      %v123 = vadd.f32 %v118, %v120
      %v124 = vadd.f32 %v123, 1e-07
      %v125 = vrcp.pop %v124
      %v126 = vmul.f32 %v118, %v125
      %v127 = vadd.f32 %v118, %v122
      %v128 = vadd.f32 %v127, 1e-07
      %v129 = vrcp.pop %v128
      %v130 = vmul.f32 %v118, %v129
      %v131 = vmul.f32 %v126, %v130
      %v132 = vmul.f32 %v131, 2.0
      %v133 = vadd.f32 %v126, %v130
      %v134 = vadd.f32 %v133, 1e-07
      %v135 = vrcp.pop %v134
      %v136 = vmul.f32 %v132, %v135
      %v137 = vmax.f32 %v136, 1e-07
      %v138 = vmin.f32 %v137, 0.9999999
      %vm139 = vcmp.lt.s32.totalorder %v46, 65
      %v140 = vsel %vm139, %v138, 0.0
      %141 = vadd.xlane.f32.xlu0 %v140
      %v142 = vpop.xlane.xlu0 %141
      %v143 = vrot.slane %v142, 4
      %v144 = vadd.f32 %v142, %v143
      %v145 = vrot.slane %v144, 2
      %v146 = vadd.f32 %v144, %v145
      %v147 = vrot.slane %v146, 1
      %v148 = vadd.f32 %v146, %v147
      %v149 = vrcp.pop 520.0
      %v150 = vmul.f32 %v148, %v149
      %v151 = vsub.f32 1.0, %v150
      %vm152 = vcmask 0
      %153 = vst.msk [vmem:[#allocation10] sm:$0x1] %vm152, %v151
    $region25: #{tpu_custom_call.1} parent=1 // pred_fallthru
      _
    // Predicated region
    $region26: #{tpu_custom_call.1} parent=1 // pred_check
      _
    $region27: #{tpu_custom_call.1} parent=1 // pred_check_branch
      %155 = sbr.rel (0) target = $region29
    $region28: #{tpu_custom_call.1} parent=1 // pred_region
      %s157 = ssub.s32 16, 16
      %158 = vsyncadd [#allocation7], %s157
      %s160 = sshll.u32 [#allocation10], 4
      %s161 = int_to_ptr.vmem [resolvable:$true] %s160
      %163 = dma.vmem_to_hbm [thread:$0]  %s161, 16, %s2, [#allocation7]
    $region29: #{tpu_custom_call.1} parent=1 // pred_fallthru
      _
    // Predicated region
    $region30: #{tpu_custom_call.1} parent=1 // pred_check
      _
    $region31: #{tpu_custom_call.1} parent=1 // pred_check_branch
      %165 = sbr.rel (0) target = $region33
    $region32: #{tpu_custom_call.1} parent=1 // pred_region
      %166 = dma.done [#allocation7], 16
    $region33: #{tpu_custom_call.1} parent=1 // pred_fallthru
      _
    %167 = vsyncpa [#allocation6], 1
    %168 = vsyncpa [#allocation9], 1
    %169 = vsyncpa [#allocation7], 1

</llo_original>
